<compile_context>
chip_gen: v7x
topology: tpu7x:2x2x1
jax: 0.10.0
libtpu: 0.0.40
codegen_flags: <defaults>
</compile_context>

<pallas_src>
import functools

import jax
import jax.numpy as jnp
from jax.experimental import pallas as pl
from jax.experimental.pallas import tpu as pltpu

# Hyperparameters implied by the PINN module (x = (space, time) -> u).
IN_PUT = 2
HIDDEN = 32
OUT_PUT = 1
N_HIDDEN_LAYERS = 3  # L2, L3, L4


def _round_up(a, b):
    return ((a + b - 1) // b) * b


def _bf16_activations_supported():
    """bf16 VPU/EUP exists on v6e / v7x; keep f32 activations elsewhere (v5e, v4...)."""
    try:
        kind = jax.devices()[0].device_kind.lower()
    except Exception:
        return False
    return ("v6" in kind) or ("v7" in kind) or ("7x" in kind)


def _mlp_kernel(x_ref, w1_ref, b1_ref, wh_ref, bh_ref, w5_ref, b5_ref, o_ref, *,
                use_bf16_act):
    """Whole 5-layer MLP forward for one batch tile, batch on the lane axis."""
    act_dtype = jnp.bfloat16 if use_bf16_act else jnp.float32

    x = x_ref[...]                                 # (in_put, tile_n) f32
    in_put = x_ref.shape[0]

    # Layer 1 on the VPU: contraction depth is only `in_put` (=2).  An MXU dot
    # here would still drain ~64 result vregs while doing almost no work, so we
    # use broadcast-FMAs on the otherwise-idle VALU slots instead (exact f32).
    z = w1_ref[:, 0:1] * x[0:1, :]                 # (hidden,1)*(1,tile) -> (hidden,tile)
    for k in range(1, in_put):
        z = z + w1_ref[:, k:k + 1] * x[k:k + 1, :]
    z = z + b1_ref[...]
    h = jnp.tanh(z.astype(act_dtype))              # (hidden, tile_n)

    # Hidden layers 2..4 on the MXU: (hidden,hidden) @ (hidden,tile) -> f32 acc.
    for l in range(N_HIDDEN_LAYERS):
        z = jnp.dot(wh_ref[l], h,
                    preferred_element_type=jnp.float32,
                    precision=jax.lax.Precision.DEFAULT) + bh_ref[l]
        h = jnp.tanh(z.astype(act_dtype))

    # Output layer 5: (out_put, hidden) @ (hidden, tile) -> (out_put, tile).
    y = jnp.dot(w5_ref[...], h,
                preferred_element_type=jnp.float32,
                precision=jax.lax.Precision.DEFAULT) + b5_ref[...]

    # Lane-dense (unmasked) store: last dim is tile_n (multiple of 128).
    o_ref[...] = y.astype(o_ref.dtype)


@functools.partial(jax.jit, static_argnames=("tile_n", "use_bf16_act"))
def _network_forward_impl(x, params, tile_n, use_bf16_act):
    n, in_put = x.shape
    assert tile_n % 128 == 0, "tile_n must be a multiple of 128 (lane width)"

    (w1, b1), (w2, b2), (w3, b3), (w4, b4), (w5, b5) = params
    hidden = w1.shape[0]
    out_put = w5.shape[0]
    act_dtype = jnp.bfloat16 if use_bf16_act else jnp.float32

    # Tile choice: as big as possible (amortize ~0.35 us/step), but keep at
    # least 2 grid steps when the batch allows so the "parallel" axis can be
    # sharded across both TensorCores on v7x (no effect on v5e/v6e).
    n128 = _round_up(n, 128)
    tile_eff = min(tile_n, max(128, _round_up(pl.cdiv(n128, 2), 128)))
    n_pad = _round_up(n, tile_eff)

    # Batch on the lane axis; zero-pad extra columns (sliced away afterwards;
    # tanh is bounded so padded lanes stay finite).
    x_t = jnp.pad(x.astype(jnp.float32).T, ((0, 0), (0, n_pad - n)))

    # Parameters in kernel layout (column-broadcast biases, stacked hidden
    # layers to cut the input-ref count).  MXU weights drop to bf16 when the
    # activations do; L1 weight and all biases stay f32 (VPU path / f32 adds).
    w1c = w1.astype(jnp.float32)                                   # (hidden, in_put)
    b1c = b1.reshape(hidden, 1).astype(jnp.float32)                # (hidden, 1)
    whc = jnp.stack([w2, w3, w4]).astype(act_dtype)                # (3, hidden, hidden)
    bhc = jnp.stack([b2, b3, b4]).reshape(
        N_HIDDEN_LAYERS, hidden, 1).astype(jnp.float32)            # (3, hidden, 1)
    w5c = w5.astype(act_dtype)                                     # (out_put, hidden)
    b5c = b5.reshape(out_put, 1).astype(jnp.float32)               # (out_put, 1)

    x_spec = pl.BlockSpec((in_put, tile_eff), lambda i: (0, i))
    o_spec = pl.BlockSpec((out_put, tile_eff), lambda i: (0, i))

    param_list = [w1c, b1c, whc, bhc, w5c, b5c]
    # Constant block indices: parameters are fetched once and stay resident in
    # VMEM across the whole grid (no per-step re-DMA).
    param_specs = [pl.BlockSpec(p.shape, lambda i, nd=p.ndim: (0,) * nd)
                   for p in param_list]

    param_bytes = int(sum(p.size * p.dtype.itemsize for p in param_list))
    cost = pl.CostEstimate(
        flops=2 * n_pad * (in_put * hidden
                           + N_HIDDEN_LAYERS * hidden * hidden
                           + hidden * out_put),
        transcendentals=(N_HIDDEN_LAYERS + 1) * hidden * n_pad,
        bytes_accessed=4 * n_pad * (in_put + out_put) + param_bytes,
    )

    kernel = functools.partial(_mlp_kernel, use_bf16_act=use_bf16_act)

    y_t = pl.pallas_call(
        kernel,
        out_shape=jax.ShapeDtypeStruct((out_put, n_pad), jnp.float32),
        grid_spec=pltpu.PrefetchScalarGridSpec(
            num_scalar_prefetch=0,
            grid=(n_pad // tile_eff,),
            in_specs=[x_spec] + param_specs,
            out_specs=o_spec,
        ),
        compiler_params=pltpu.CompilerParams(
            dimension_semantics=("parallel",),
            vmem_limit_bytes=32 * 1024 * 1024),
        cost_estimate=cost,
    )(x_t, *param_list)

    return y_t[:, :n].T                                            # (N, out_put)


def network_forward(x, params, tile_n=8192, use_bf16_act=None):
    """Runs the NETWORK MLP forward via a single pallas_call tiled over the batch.

    x: (N, in_put) float32.  params: list of (W, b) in torch layout
    (W: (fan_out, fan_in), b: (fan_out,)).  Returns (N, out_put) float32.
    """
    if use_bf16_act is None:
        use_bf16_act = _bf16_activations_supported()
    return _network_forward_impl(x, params, tile_n=tile_n,
                                 use_bf16_act=bool(use_bf16_act))


def init_params(key, in_put=IN_PUT, hidden=HIDDEN, out_put=OUT_PUT):
    """Deterministic init mimicking torch.nn.Linear default, torch layout."""
    dims = [(in_put, hidden), (hidden, hidden), (hidden, hidden),
            (hidden, hidden), (hidden, out_put)]
    params = []
    for fan_in, fan_out in dims:
        key, kw, kb = jax.random.split(key, 3)
        bound = 1.0 / jnp.sqrt(jnp.float32(fan_in))
        w = jax.random.uniform(kw, (fan_out, fan_in), jnp.float32, -bound, bound)
        b = jax.random.uniform(kb, (fan_out,), jnp.float32, -bound, bound)
        params.append((w, b))
    return params


def network_reference(x, params):
    """True-f32 reference of the same forward pass (torch semantics: x @ W.T + b)."""
    h = x
    for i, (w, b) in enumerate(params):
        h = jnp.dot(h, w.T, precision=jax.lax.Precision.HIGHEST) + b
        if i < len(params) - 1:
            h = jnp.tanh(h)
    return h


if __name__ == "__main__":
    key = jax.random.PRNGKey(0)
    k_x, k_p = jax.random.split(key)

    N = 300  # small, NOT a multiple of 128: exercises the padding path + a 2-step grid
    x = jax.random.uniform(k_x, (N, IN_PUT), jnp.float32, -1.0, 1.0)
    params = init_params(k_p)

    use_bf16 = _bf16_activations_supported()
    y = network_forward(x, params, use_bf16_act=use_bf16)
    y = jax.block_until_ready(y)
    assert y.shape == (N, OUT_PUT)

    # Compare against a full-f32 reference.  The kernel uses single-pass MXU
    # (bf16-truncated operands) and, on v6e/v7x, bf16 activations, so use a
    # relative-L2 criterion sized for bf16 accuracy.
    y_ref = network_reference(x, params)
    rel = float(jnp.linalg.norm(y - y_ref) / jnp.linalg.norm(y_ref))
    tol = 0.05 if use_bf16 else 0.02
    assert rel < tol, f"relative L2 error {rel:.3e} exceeds {tol}"

    print("KERNEL_OK")
</pallas_src>

<mosaic_0001>
module attributes {stable_mosaic.version = 11 : i64} {
  func.func @_mlp_kernel(%arg0: i32, %arg1: memref<2x256xf32, #tpu.memory_space<vmem>>, %arg2: memref<32x2xf32, #tpu.memory_space<vmem>>, %arg3: memref<32x1xf32, #tpu.memory_space<vmem>>, %arg4: memref<3x32x32xf32, #tpu.memory_space<vmem>>, %arg5: memref<3x32x1xf32, #tpu.memory_space<vmem>>, %arg6: memref<1x32xf32, #tpu.memory_space<vmem>>, %arg7: memref<1x1xf32, #tpu.memory_space<vmem>>, %arg8: memref<1x256xf32, #tpu.memory_space<vmem>>) attributes {dimension_semantics = [#tpu.dimension_semantics<parallel>], iteration_bounds = array<i64: 2>, scalar_prefetch = 0 : i64, scratch_operands = 0 : i64, tpu.core_type = #tpu.core_type<tc>, window_params = [{transform_indices = @transform_0, window_bounds = array<i64: 2, 256>}, {pipeline_mode = #tpu.pipeline_mode<synchronous>, transform_indices = @transform_1, window_bounds = array<i64: 32, 2>}, {pipeline_mode = #tpu.pipeline_mode<synchronous>, transform_indices = @transform_2, window_bounds = array<i64: 32, 1>}, {pipeline_mode = #tpu.pipeline_mode<synchronous>, transform_indices = @transform_3, window_bounds = array<i64: 3, 32, 32>}, {pipeline_mode = #tpu.pipeline_mode<synchronous>, transform_indices = @transform_4, window_bounds = array<i64: 3, 32, 1>}, {pipeline_mode = #tpu.pipeline_mode<synchronous>, transform_indices = @transform_5, window_bounds = array<i64: 1, 32>}, {pipeline_mode = #tpu.pipeline_mode<synchronous>, transform_indices = @transform_6, window_bounds = array<i64: 1, 1>}, {transform_indices = @transform_7, window_bounds = array<i64: 1, 256>}]} {
    %c0 = arith.constant 0 : index
    %c0_0 = arith.constant 0 : index
    %0 = vector.load %arg1[%c0, %c0_0] : memref<2x256xf32, #tpu.memory_space<vmem>>, vector<2x256xf32>
    %c0_1 = arith.constant 0 : index
    %c0_2 = arith.constant 0 : index
    %1 = vector.load %arg2[%c0_1, %c0_2] : memref<32x2xf32, #tpu.memory_space<vmem>>, vector<32x1xf32>
    %2 = vector.extract_strided_slice %0 {offsets = [0, 0], sizes = [1, 256], strides = [1, 1]} : vector<2x256xf32> to vector<1x256xf32>
    %3 = vector.broadcast %1 : vector<32x1xf32> to vector<32x256xf32>
    %4 = vector.broadcast %2 : vector<1x256xf32> to vector<32x256xf32>
    %5 = arith.mulf %3, %4 : vector<32x256xf32>
    %c0_3 = arith.constant 0 : index
    %c1 = arith.constant 1 : index
    %6 = vector.load %arg2[%c0_3, %c1] : memref<32x2xf32, #tpu.memory_space<vmem>>, vector<32x1xf32>
    %7 = vector.extract_strided_slice %0 {offsets = [1, 0], sizes = [1, 256], strides = [1, 1]} : vector<2x256xf32> to vector<1x256xf32>
    %8 = vector.broadcast %6 : vector<32x1xf32> to vector<32x256xf32>
    %9 = vector.broadcast %7 : vector<1x256xf32> to vector<32x256xf32>
    %10 = arith.mulf %8, %9 : vector<32x256xf32>
    %11 = arith.addf %5, %10 : vector<32x256xf32>
    %c0_4 = arith.constant 0 : index
    %c0_5 = arith.constant 0 : index
    %12 = vector.load %arg3[%c0_4, %c0_5] : memref<32x1xf32, #tpu.memory_space<vmem>>, vector<32x1xf32>
    %13 = vector.broadcast %12 : vector<32x1xf32> to vector<32x256xf32>
    %14 = arith.addf %11, %13 : vector<32x256xf32>
    %15 = math.tanh %14 : vector<32x256xf32>
    %c0_6 = arith.constant 0 : index
    %c0_7 = arith.constant 0 : index
    %c0_8 = arith.constant 0 : index
    %16 = vector.load %arg4[%c0_6, %c0_7, %c0_8] : memref<3x32x32xf32, #tpu.memory_space<vmem>>, vector<1x32x32xf32>
    %17 = vector.shape_cast %16 : vector<1x32x32xf32> to vector<32x32xf32>
    %cst = arith.constant dense<0.000000e+00> : vector<32x256xf32>
    %18 = tpu.matmul %17, %15, %cst {dimension_numbers = #tpu.dot_dimension_numbers<[1], [0], [0], [1], [0, 0, 1, 1], [], []>} : vector<32x32xf32>, vector<32x256xf32>, vector<32x256xf32> -> vector<32x256xf32>
    %c0_9 = arith.constant 0 : index
    %c0_10 = arith.constant 0 : index
    %c0_11 = arith.constant 0 : index
    %19 = vector.load %arg5[%c0_9, %c0_10, %c0_11] : memref<3x32x1xf32, #tpu.memory_space<vmem>>, vector<1x32x1xf32>
    %20 = vector.shape_cast %19 : vector<1x32x1xf32> to vector<32x1xf32>
    %21 = vector.broadcast %20 : vector<32x1xf32> to vector<32x256xf32>
    %22 = arith.addf %18, %21 : vector<32x256xf32>
    %23 = math.tanh %22 : vector<32x256xf32>
    %c1_12 = arith.constant 1 : index
    %c0_13 = arith.constant 0 : index
    %c0_14 = arith.constant 0 : index
    %24 = vector.load %arg4[%c1_12, %c0_13, %c0_14] : memref<3x32x32xf32, #tpu.memory_space<vmem>>, vector<1x32x32xf32>
    %25 = vector.shape_cast %24 : vector<1x32x32xf32> to vector<32x32xf32>
    %cst_15 = arith.constant dense<0.000000e+00> : vector<32x256xf32>
    %26 = tpu.matmul %25, %23, %cst_15 {dimension_numbers = #tpu.dot_dimension_numbers<[1], [0], [0], [1], [0, 0, 1, 1], [], []>} : vector<32x32xf32>, vector<32x256xf32>, vector<32x256xf32> -> vector<32x256xf32>
    %c1_16 = arith.constant 1 : index
    %c0_17 = arith.constant 0 : index
    %c0_18 = arith.constant 0 : index
    %27 = vector.load %arg5[%c1_16, %c0_17, %c0_18] : memref<3x32x1xf32, #tpu.memory_space<vmem>>, vector<1x32x1xf32>
    %28 = vector.shape_cast %27 : vector<1x32x1xf32> to vector<32x1xf32>
    %29 = vector.broadcast %28 : vector<32x1xf32> to vector<32x256xf32>
    %30 = arith.addf %26, %29 : vector<32x256xf32>
    %31 = math.tanh %30 : vector<32x256xf32>
    %c2 = arith.constant 2 : index
    %c0_19 = arith.constant 0 : index
    %c0_20 = arith.constant 0 : index
    %32 = vector.load %arg4[%c2, %c0_19, %c0_20] : memref<3x32x32xf32, #tpu.memory_space<vmem>>, vector<1x32x32xf32>
    %33 = vector.shape_cast %32 : vector<1x32x32xf32> to vector<32x32xf32>
    %cst_21 = arith.constant dense<0.000000e+00> : vector<32x256xf32>
    %34 = tpu.matmul %33, %31, %cst_21 {dimension_numbers = #tpu.dot_dimension_numbers<[1], [0], [0], [1], [0, 0, 1, 1], [], []>} : vector<32x32xf32>, vector<32x256xf32>, vector<32x256xf32> -> vector<32x256xf32>
    %c2_22 = arith.constant 2 : index
    %c0_23 = arith.constant 0 : index
    %c0_24 = arith.constant 0 : index
    %35 = vector.load %arg5[%c2_22, %c0_23, %c0_24] : memref<3x32x1xf32, #tpu.memory_space<vmem>>, vector<1x32x1xf32>
    %36 = vector.shape_cast %35 : vector<1x32x1xf32> to vector<32x1xf32>
    %37 = vector.broadcast %36 : vector<32x1xf32> to vector<32x256xf32>
    %38 = arith.addf %34, %37 : vector<32x256xf32>
    %39 = math.tanh %38 : vector<32x256xf32>
    %c0_25 = arith.constant 0 : index
    %c0_26 = arith.constant 0 : index
    %40 = vector.load %arg6[%c0_25, %c0_26] : memref<1x32xf32, #tpu.memory_space<vmem>>, vector<1x32xf32>
    %cst_27 = arith.constant dense<0.000000e+00> : vector<1x256xf32>
    %41 = tpu.matmul %40, %39, %cst_27 {dimension_numbers = #tpu.dot_dimension_numbers<[1], [0], [0], [1], [0, 0, 1, 1], [], []>} : vector<1x32xf32>, vector<32x256xf32>, vector<1x256xf32> -> vector<1x256xf32>
    %c0_28 = arith.constant 0 : index
    %c0_29 = arith.constant 0 : index
    %42 = vector.load %arg7[%c0_28, %c0_29] : memref<1x1xf32, #tpu.memory_space<vmem>>, vector<1x1xf32>
    %43 = vector.broadcast %42 : vector<1x1xf32> to vector<1x256xf32>
    %44 = arith.addf %41, %43 : vector<1x256xf32>
    %c0_30 = arith.constant 0 : index
    %c0_31 = arith.constant 0 : index
    %45 = vector.load %arg8[%c0_30, %c0_31] : memref<1x256xf32, #tpu.memory_space<vmem>>, vector<1x256xf32>
    tpu.vector_store %arg8[%c0_30, %c0_31], %44 {strides = array<i32>} : memref<1x256xf32, #tpu.memory_space<vmem>>, vector<1x256xf32>,
    return
  }
  func.func @transform_0(%arg0: i32) -> (i32, i32) {
    %c0_i32 = arith.constant 0 : i32
    %c0_i32_0 = arith.constant 0 : i32
    return %c0_i32, %arg0 : i32, i32
  }
  func.func @transform_1(%arg0: i32) -> (i32, i32) {
    %c0_i32 = arith.constant 0 : i32
    %c0_i32_0 = arith.constant 0 : i32
    %c0_i32_1 = arith.constant 0 : i32
    return %c0_i32, %c0_i32_0 : i32, i32
  }
  func.func @transform_2(%arg0: i32) -> (i32, i32) {
    %c0_i32 = arith.constant 0 : i32
    %c0_i32_0 = arith.constant 0 : i32
    %c0_i32_1 = arith.constant 0 : i32
    return %c0_i32, %c0_i32_0 : i32, i32
  }
  func.func @transform_3(%arg0: i32) -> (i32, i32, i32) {
    %c0_i32 = arith.constant 0 : i32
    %c0_i32_0 = arith.constant 0 : i32
    %c0_i32_1 = arith.constant 0 : i32
    %c0_i32_2 = arith.constant 0 : i32
    return %c0_i32, %c0_i32_0, %c0_i32_1 : i32, i32, i32
  }
  func.func @transform_4(%arg0: i32) -> (i32, i32, i32) {
    %c0_i32 = arith.constant 0 : i32
    %c0_i32_0 = arith.constant 0 : i32
    %c0_i32_1 = arith.constant 0 : i32
    %c0_i32_2 = arith.constant 0 : i32
    return %c0_i32, %c0_i32_0, %c0_i32_1 : i32, i32, i32
  }
  func.func @transform_5(%arg0: i32) -> (i32, i32) {
    %c0_i32 = arith.constant 0 : i32
    %c0_i32_0 = arith.constant 0 : i32
    %c0_i32_1 = arith.constant 0 : i32
    return %c0_i32, %c0_i32_0 : i32, i32
  }
  func.func @transform_6(%arg0: i32) -> (i32, i32) {
    %c0_i32 = arith.constant 0 : i32
    %c0_i32_0 = arith.constant 0 : i32
    %c0_i32_1 = arith.constant 0 : i32
    return %c0_i32, %c0_i32_0 : i32, i32
  }
  func.func @transform_7(%arg0: i32) -> (i32, i32) {
    %c0_i32 = arith.constant 0 : i32
    %c0_i32_0 = arith.constant 0 : i32
    return %c0_i32, %arg0 : i32, i32
  }
}

</mosaic_0001>

<llo_original>
// kernel: _network_forward_impl.1
$region0: #{_network_forward_impl.1}
  #allocation0 [shape = 'u32[]', space=smem, size = 0x4, offset = 0x4, fixed_abs, tag = 'smem constant byte address 0x4 - core index']
  #allocation1 [shape = 'u32[144,128]{1,0:T(1,128)}', space=vmem, size = 0x12000, scoped, tag = 'internal scratch']
  #allocation2 [shape = 'f32[1,1]{1,0:T(1,128)S(1)}', space=vmem, size = 0x200, scoped, tag = 'scoped memory for _network_forward_impl.1']
  %s0 = inlined_call_operand.vmem [shape: f32[2,512], index: 0, kind: input, shape index: {}]
  %s1 = inlined_call_operand.vmem [shape: f32[32,2], index: 1, kind: input, shape index: {}]
  %s2 = inlined_call_operand.vmem [shape: f32[32,1], index: 2, kind: input, shape index: {}]
  %s3 = inlined_call_operand.vmem [shape: f32[3,32,32], index: 3, kind: input, shape index: {}]
  %s4 = inlined_call_operand.vmem [shape: f32[3,32,1], index: 4, kind: input, shape index: {}]
  %s5 = inlined_call_operand.vmem [shape: f32[1,32], index: 5, kind: input, shape index: {}]
  %s6 = inlined_call_operand.<no memory space> [shape: f32[1,1], index: 6, kind: input, shape index: {}]
  %s7 = inlined_call_operand.vmem [shape: f32[1,512], index: 7, kind: output, shape index: {}]
  %s8 = sld [smem:[#allocation0]]
  $region61: #{_network_forward_impl.1} parent=0
    _
  %s10 = ssub.s32 1, %s8
  %s11 = scalar_select 0, %s10, %s8
  %v12 = vstv %s6
  %13 = vst [vmem:[#allocation2] sm:$0x1] %v12
  loop: start=0, step=1, limit=4
  $region2: #{_network_forward_impl.1} parent=0 // loop_pre_header
    _
  $region3: #{_network_forward_impl.1} parent=0 // loop_header
    %s15 = sphi 0, %s19
    %p16 = scmp.ge.s32.totalorder %s15, 4
    %s25 = sphi 0, %s27
    %s28 = sphi 0, %s25
    %s29 = sphi 0, %s28
    %s45 = sphi 0, %s29
    %s49 = sphi 0, %s49
    %s51 = sphi 0, %s49
    %s52 = sphi 0, %s51
    %s66 = sphi 0, %s52
    %s70 = sphi 0, %s70
    %s72 = sphi 0, %s70
    %s73 = sphi 0, %s72
    %s87 = sphi 0, %s73
    %s91 = sphi 0, %s91
    %s93 = sphi 0, %s91
    %s94 = sphi 0, %s93
    %s108 = sphi 0, %s94
    %s112 = sphi 0, %s112
    %s114 = sphi 0, %s112
    %s115 = sphi 0, %s114
    %s129 = sphi 0, %s115
    %s133 = sphi 0, %s133
    %s135 = sphi 0, %s133
    %s136 = sphi 0, %s135
    %s150 = sphi 0, %s136
    %s154 = sphi 0, %s154
    %s156 = sphi 0, %s154
    %s157 = sphi 0, %s156
    %s171 = sphi 0, %s157
    %s177 = sphi 0, %s179
    %s180 = sphi 0, %s177
    %s181 = sphi 0, %s180
    %s197 = sphi 0, %s181
  $region4: #{_network_forward_impl.1} parent=0 // loop_header_branch
    %18 = sbr.rel (%p16) target = $region8
  $region5: #{_network_forward_impl.1} parent=0 // loop_body
    %s20 = ssub.s32 %s15, 1
    %s21 = ssub.s32 %s15, 2
    %s22 = sadd.s32 %s15, 1
    %s23 = ssub.s32 %s15, %s22
    %p24 = scmp.eq.s32.totalorder %s23, 0
    %s26 = sadd.s32 %s25, 1
    %s27 = scalar_select %p24, %s25, %s26
    %p30 = pneg %p24
    %p31 = scmp.eq.s32.totalorder %s15, 1
    %p32 = por %p30, %p31
    %p33 = scmp.ne.s32.totalorder %s25, %s28
    %p34 = scmp.eq.s32.totalorder %s15, 0
    %p35 = por %p33, %p34
    %p36 = scmp.ne.s32.totalorder %s25, %s28
    %p37 = scmp.eq.s32.totalorder %s20, 1
    %p38 = por %p36, %p37
    %p39 = scmp.ne.s32.totalorder %s28, %s29
    %p40 = scmp.eq.s32.totalorder %s20, 0
    %p41 = por %p39, %p40
    %p42 = scmp.ne.s32.totalorder %s28, %s29
    %p43 = scmp.eq.s32.totalorder %s21, 1
    %p44 = por %p42, %p43
    %p46 = scmp.ne.s32.totalorder %s29, %s45
    %p47 = scmp.eq.s32.totalorder %s21, 0
    %p48 = por %p46, %p47
    %s50 = sadd.s32 %s49, 1
    %p53 = scmp.eq.s32.totalorder %s15, 1
    %p54 = scmp.ne.s32.totalorder %s49, %s51
    %p55 = scmp.eq.s32.totalorder %s15, 0
    %p56 = por %p54, %p55
    %p57 = scmp.ne.s32.totalorder %s49, %s51
    %p58 = scmp.eq.s32.totalorder %s20, 1
    %p59 = por %p57, %p58
    %p60 = scmp.ne.s32.totalorder %s51, %s52
    %p61 = scmp.eq.s32.totalorder %s20, 0
    %p62 = por %p60, %p61
    %p63 = scmp.ne.s32.totalorder %s51, %s52
    %p64 = scmp.eq.s32.totalorder %s21, 1
    %p65 = por %p63, %p64
    %p67 = scmp.ne.s32.totalorder %s52, %s66
    %p68 = scmp.eq.s32.totalorder %s21, 0
    %p69 = por %p67, %p68
    %s71 = sadd.s32 %s70, 1
    %p74 = scmp.eq.s32.totalorder %s15, 1
    %p75 = scmp.ne.s32.totalorder %s70, %s72
    %p76 = scmp.eq.s32.totalorder %s15, 0
    %p77 = por %p75, %p76
    %p78 = scmp.ne.s32.totalorder %s70, %s72
    %p79 = scmp.eq.s32.totalorder %s20, 1
    %p80 = por %p78, %p79
    %p81 = scmp.ne.s32.totalorder %s72, %s73
    %p82 = scmp.eq.s32.totalorder %s20, 0
    %p83 = por %p81, %p82
    %p84 = scmp.ne.s32.totalorder %s72, %s73
    %p85 = scmp.eq.s32.totalorder %s21, 1
    %p86 = por %p84, %p85
    %p88 = scmp.ne.s32.totalorder %s73, %s87
    %p89 = scmp.eq.s32.totalorder %s21, 0
    %p90 = por %p88, %p89
    %s92 = sadd.s32 %s91, 1
    %p95 = scmp.eq.s32.totalorder %s15, 1
    %p96 = scmp.ne.s32.totalorder %s91, %s93
    %p97 = scmp.eq.s32.totalorder %s15, 0
    %p98 = por %p96, %p97
    %p99 = scmp.ne.s32.totalorder %s91, %s93
    %p100 = scmp.eq.s32.totalorder %s20, 1
    %p101 = por %p99, %p100
    %p102 = scmp.ne.s32.totalorder %s93, %s94
    %p103 = scmp.eq.s32.totalorder %s20, 0
    %p104 = por %p102, %p103
    %p105 = scmp.ne.s32.totalorder %s93, %s94
    %p106 = scmp.eq.s32.totalorder %s21, 1
    %p107 = por %p105, %p106
    %p109 = scmp.ne.s32.totalorder %s94, %s108
    %p110 = scmp.eq.s32.totalorder %s21, 0
    %p111 = por %p109, %p110
    %s113 = sadd.s32 %s112, 1
    %p116 = scmp.eq.s32.totalorder %s15, 1
    %p117 = scmp.ne.s32.totalorder %s112, %s114
    %p118 = scmp.eq.s32.totalorder %s15, 0
    %p119 = por %p117, %p118
    %p120 = scmp.ne.s32.totalorder %s112, %s114
    %p121 = scmp.eq.s32.totalorder %s20, 1
    %p122 = por %p120, %p121
    %p123 = scmp.ne.s32.totalorder %s114, %s115
    %p124 = scmp.eq.s32.totalorder %s20, 0
    %p125 = por %p123, %p124
    %p126 = scmp.ne.s32.totalorder %s114, %s115
    %p127 = scmp.eq.s32.totalorder %s21, 1
    %p128 = por %p126, %p127
    %p130 = scmp.ne.s32.totalorder %s115, %s129
    %p131 = scmp.eq.s32.totalorder %s21, 0
    %p132 = por %p130, %p131
    %s134 = sadd.s32 %s133, 1
    %p137 = scmp.eq.s32.totalorder %s15, 1
    %p138 = scmp.ne.s32.totalorder %s133, %s135
    %p139 = scmp.eq.s32.totalorder %s15, 0
    %p140 = por %p138, %p139
    %p141 = scmp.ne.s32.totalorder %s133, %s135
    %p142 = scmp.eq.s32.totalorder %s20, 1
    %p143 = por %p141, %p142
    %p144 = scmp.ne.s32.totalorder %s135, %s136
    %p145 = scmp.eq.s32.totalorder %s20, 0
    %p146 = por %p144, %p145
    %p147 = scmp.ne.s32.totalorder %s135, %s136
    %p148 = scmp.eq.s32.totalorder %s21, 1
    %p149 = por %p147, %p148
    %p151 = scmp.ne.s32.totalorder %s136, %s150
    %p152 = scmp.eq.s32.totalorder %s21, 0
    %p153 = por %p151, %p152
    %s155 = sadd.s32 %s154, 1
    %p158 = scmp.eq.s32.totalorder %s15, 1
    %p159 = scmp.ne.s32.totalorder %s154, %s156
    %p160 = scmp.eq.s32.totalorder %s15, 0
    %p161 = por %p159, %p160
    %p162 = scmp.ne.s32.totalorder %s154, %s156
    %p163 = scmp.eq.s32.totalorder %s20, 1
    %p164 = por %p162, %p163
    %p165 = scmp.ne.s32.totalorder %s156, %s157
    %p166 = scmp.eq.s32.totalorder %s20, 0
    %p167 = por %p165, %p166
    %p168 = scmp.ne.s32.totalorder %s156, %s157
    %p169 = scmp.eq.s32.totalorder %s21, 1
    %p170 = por %p168, %p169
    %p172 = scmp.ne.s32.totalorder %s157, %s171
    %p173 = scmp.eq.s32.totalorder %s21, 0
    %p174 = por %p172, %p173
    %s175 = ssub.s32 %s15, %s22
    %p176 = scmp.eq.s32.totalorder %s175, 0
    %s178 = sadd.s32 %s177, 1
    %s179 = scalar_select %p176, %s177, %s178
    %p182 = pneg %p176
    %p183 = scmp.eq.s32.totalorder %s15, 1
    %p184 = por %p182, %p183
    %p185 = scmp.ne.s32.totalorder %s177, %s180
    %p186 = scmp.eq.s32.totalorder %s15, 0
    %p187 = por %p185, %p186
    %p188 = scmp.ne.s32.totalorder %s177, %s180
    %p189 = scmp.eq.s32.totalorder %s20, 1
    %p190 = por %p188, %p189
    %p191 = scmp.ne.s32.totalorder %s180, %s181
    %p192 = scmp.eq.s32.totalorder %s20, 0
    %p193 = por %p191, %p192
    %p194 = scmp.ne.s32.totalorder %s180, %s181
    %p195 = scmp.eq.s32.totalorder %s21, 1
    %p196 = por %p194, %p195
    %p198 = scmp.ne.s32.totalorder %s181, %s197
    %p199 = scmp.eq.s32.totalorder %s21, 0
    %p200 = por %p198, %p199
    %p201 = scmp.le.s32.totalorder 1, %s15
    %p202 = scmp.lt.s32.totalorder %s15, 3
    %p203 = pnand %p201, %p202
    %p204 = pneg %p203
    // Predicated region
    $region9: #{_network_forward_impl.1} parent=5 // pred_check
      _
    $region10: #{_network_forward_impl.1} parent=5 // pred_check_branch
      %206 = sbr.rel (%p203) target = $region12
    $region11: #{_network_forward_impl.1} parent=5 // pred_region
      %s207 = ssub.s32 %s15, 1
      // Predicated region
      $region13: #{_network_forward_impl.1} parent=11 // pred_check
        %p208 = pneg %p62
      $region14: #{_network_forward_impl.1} parent=11 // pred_check_branch
        %210 = sbr.rel (%p208) target = $region16
      $region15: #{_network_forward_impl.1} parent=11 // pred_region
        _
      $region16: #{_network_forward_impl.1} parent=11 // pred_fallthru
        _
      // Predicated region
      $region17: #{_network_forward_impl.1} parent=11 // pred_check
        %p211 = pneg %p83
      $region18: #{_network_forward_impl.1} parent=11 // pred_check_branch
        %213 = sbr.rel (%p211) target = $region20
      $region19: #{_network_forward_impl.1} parent=11 // pred_region
        _
      $region20: #{_network_forward_impl.1} parent=11 // pred_fallthru
        _
      // Predicated region
      $region21: #{_network_forward_impl.1} parent=11 // pred_check
        %p214 = pneg %p104
      $region22: #{_network_forward_impl.1} parent=11 // pred_check_branch
        %216 = sbr.rel (%p214) target = $region24
      $region23: #{_network_forward_impl.1} parent=11 // pred_region
        _
      $region24: #{_network_forward_impl.1} parent=11 // pred_fallthru
        _
      // Predicated region
      $region25: #{_network_forward_impl.1} parent=11 // pred_check
        %p217 = pneg %p125
      $region26: #{_network_forward_impl.1} parent=11 // pred_check_branch
        %219 = sbr.rel (%p217) target = $region28
      $region27: #{_network_forward_impl.1} parent=11 // pred_region
        _
      $region28: #{_network_forward_impl.1} parent=11 // pred_fallthru
        _
      // Predicated region
      $region29: #{_network_forward_impl.1} parent=11 // pred_check
        %p220 = pneg %p146
      $region30: #{_network_forward_impl.1} parent=11 // pred_check_branch
        %222 = sbr.rel (%p220) target = $region32
      $region31: #{_network_forward_impl.1} parent=11 // pred_region
        _
      $region32: #{_network_forward_impl.1} parent=11 // pred_fallthru
        _
      // Predicated region
      $region33: #{_network_forward_impl.1} parent=11 // pred_check
        %p223 = pneg %p167
      $region34: #{_network_forward_impl.1} parent=11 // pred_check_branch
        %225 = sbr.rel (%p223) target = $region36
      $region35: #{_network_forward_impl.1} parent=11 // pred_region
        _
      $region36: #{_network_forward_impl.1} parent=11 // pred_fallthru
        _
    $region12: #{_network_forward_impl.1} parent=5 // pred_fallthru
      _
    %p226 = scmp.lt.s32.totalorder %s15, 2
    // Predicated region
    $region37: #{_network_forward_impl.1} parent=5 // pred_check
      %p227 = pneg %p226
    $region38: #{_network_forward_impl.1} parent=5 // pred_check_branch
      %229 = sbr.rel (%p227) target = $region40
    $region39: #{_network_forward_impl.1} parent=5 // pred_region
      // Predicated region
      $region41: #{_network_forward_impl.1} parent=39 // pred_check
        %p230 = pneg %p35
      $region42: #{_network_forward_impl.1} parent=39 // pred_check_branch
        %232 = sbr.rel (%p230) target = $region44
      $region43: #{_network_forward_impl.1} parent=39 // pred_region
        %s233 = smul.u32 2, %s15
        %p234 = scmp.lt.s32.totalorder %s233, 3
        %s235 = scalar_select %p234, %s233, 3
        %s236 = smul.addr %s235, 2
        %s237 = scalar_lea.vmem %s0, %s236
        %s238 = smul.u32 2, %s15
      $region44: #{_network_forward_impl.1} parent=39 // pred_fallthru
        _
    $region40: #{_network_forward_impl.1} parent=5 // pred_fallthru
      _
    %p239 = scmp.le.s32.totalorder 1, %s15
    %p240 = scmp.lt.s32.totalorder %s15, 3
    %p241 = pnand %p239, %p240
    %p242 = pneg %p241
    // Predicated region
    $region45: #{_network_forward_impl.1} parent=5 // pred_check
      _
    $region46: #{_network_forward_impl.1} parent=5 // pred_check_branch
      %244 = sbr.rel (%p241) target = $region48
    $region47: #{_network_forward_impl.1} parent=5 // pred_region
      %s245 = ssub.s32 %s15, 1
      %s246 = smul.u32 2, %s20
      %p247 = scmp.lt.s32.totalorder %s246, 3
      %s248 = scalar_select %p247, %s246, 3
      %s249 = smul.addr %s248, 2
      %s250 = scalar_lea.vmem %s0, %s249
      %p251 = pneg %p41
      %p252 = pneg %p38
      %p253 = pneg %p62
      %p254 = pneg %p59
      %p255 = pneg %p83
      %p256 = pneg %p80
      %p257 = pneg %p104
      %p258 = pneg %p101
      %p259 = pneg %p125
      %p260 = pneg %p122
      %p261 = pneg %p146
      %p262 = pneg %p143
      %p263 = pneg %p167
      %p264 = pneg %p164
      %p265 = pneg %p193
      %p266 = pneg %p190
      %s267 = smul.u32 2, %s20
      %p268 = scmp.lt.s32.totalorder %s267, 3
      %s269 = scalar_select %p268, %s267, 3
      %s270 = scalar_lea.vmem %s7, %s269
      %s271 = smul.u32 2, %s20
      %p272 = scmp.lt.s32.totalorder %s271, 3
      %s273 = scalar_select %p272, %s271, 3
      %s274 = smul.addr %s273, 2
      %s275 = scalar_lea.vmem %s0, %s274
      %s276 = smul.u32 2, %s20
      %s277 = smul.u32 2, %s20
      %p278 = scmp.lt.s32.totalorder %s277, 3
      %s279 = scalar_select %p278, %s277, 3
      %s280 = scalar_lea.vmem %s7, %s279
      %s281 = smul.u32 2, %s20
      %v282 = vld [vmem:[%s275] sm:$0xf]
      %v283 = vld [vmem:[%s1] sm:$0xff]
      %v284 = vld [vmem:[%s1 + $0x8] sm:$0xff]
      %v285 = vld [vmem:[%s1 + $0x10] sm:$0xff]
      %v286 = vld [vmem:[%s1 + $0x18] sm:$0xff]
      %288 = vset.pattern.permute.xlu0 0
      %289 = vperm.xlu0 %288, %v283
      %v290 = vpop.permute.xlu0 %289
      %293 = vset.pattern.permute.xlu0 0
      %294 = vperm.xlu0 %293, %v284
      %v295 = vpop.permute.xlu0 %294
      %298 = vset.pattern.permute.xlu0 0
      %299 = vperm.xlu0 %298, %v285
      %v300 = vpop.permute.xlu0 %299
      %303 = vset.pattern.permute.xlu0 0
      %304 = vperm.xlu0 %303, %v286
      %v305 = vpop.permute.xlu0 %304
      %v308 = vlaneseq
      %v309 = vshrl.u32 %v308, 7
      %v310 = vsub.s32 0, %v309
      %v311 = vrot.slane %v282, %v310
      %v312 = vlaneseq
      %v313 = vshrl.u32 %v312, 7
      %v314 = vsub.s32 2, %v313
      %v315 = vrot.slane %v282, %v314
      %v318 = vlaneseq
      %v319 = vshrl.u32 %v318, 7
      %v320 = vsub.s32 0, %v319
      %v321 = vrot.slane %v311, %v320
      %v322 = vlaneseq
      %v323 = vshrl.u32 %v322, 7
      %v324 = vsub.s32 0, %v323
      %v325 = vrot.slane %v315, %v324
      %v326 = vmul.f32 %v290, %v321
      %v327 = vmul.f32 %v290, %v325
      %v328 = vmul.f32 %v295, %v321
      %v329 = vmul.f32 %v295, %v325
      %v330 = vmul.f32 %v300, %v321
      %v331 = vmul.f32 %v300, %v325
      %v332 = vmul.f32 %v305, %v321
      %v333 = vmul.f32 %v305, %v325
      %334 = vset.pattern.permute.xlu0 1
      %335 = vperm.xlu0 %334, %v283
      %v336 = vpop.permute.xlu0 %335
      %338 = vset.pattern.permute.xlu0 1
      %339 = vperm.xlu0 %338, %v284
      %v340 = vpop.permute.xlu0 %339
      %342 = vset.pattern.permute.xlu0 1
      %343 = vperm.xlu0 %342, %v285
      %v344 = vpop.permute.xlu0 %343
      %346 = vset.pattern.permute.xlu0 1
      %347 = vperm.xlu0 %346, %v286
      %v348 = vpop.permute.xlu0 %347
      %v350 = vlaneseq
      %v351 = vshrl.u32 %v350, 7
      %v352 = vsub.s32 1, %v351
      %v353 = vrot.slane %v282, %v352
      %v354 = vlaneseq
      %v355 = vshrl.u32 %v354, 7
      %v356 = vsub.s32 3, %v355
      %v357 = vrot.slane %v282, %v356
      %v360 = vlaneseq
      %v361 = vshrl.u32 %v360, 7
      %v362 = vsub.s32 1, %v361
      %v363 = vrot.slane %v353, %v362
      %v364 = vlaneseq
      %v365 = vshrl.u32 %v364, 7
      %v366 = vsub.s32 1, %v365
      %v367 = vrot.slane %v357, %v366
      %v368 = vmul.f32 %v336, %v363
      %v369 = vmul.f32 %v336, %v367
      %v370 = vmul.f32 %v340, %v363
      %v371 = vmul.f32 %v340, %v367
      %v372 = vmul.f32 %v344, %v363
      %v373 = vmul.f32 %v344, %v367
      %v374 = vmul.f32 %v348, %v363
      %v375 = vmul.f32 %v348, %v367
      %v376 = vadd.f32 %v326, %v368
      %v377 = vadd.f32 %v327, %v369
      %v378 = vadd.f32 %v328, %v370
      %v379 = vadd.f32 %v329, %v371
      %v380 = vadd.f32 %v330, %v372
      %v381 = vadd.f32 %v331, %v373
      %v382 = vadd.f32 %v332, %v374
      %v383 = vadd.f32 %v333, %v375
      %v384 = vld [vmem:[%s2] sm:$0xff]
      %v385 = vld [vmem:[%s2 + $0x8] sm:$0xff]
      %v386 = vld [vmem:[%s2 + $0x10] sm:$0xff]
      %v387 = vld [vmem:[%s2 + $0x18] sm:$0xff]
      %389 = vset.pattern.permute.xlu0 0
      %390 = vperm.xlu0 %389, %v384
      %v391 = vpop.permute.xlu0 %390
      %394 = vset.pattern.permute.xlu0 0
      %395 = vperm.xlu0 %394, %v385
      %v396 = vpop.permute.xlu0 %395
      %399 = vset.pattern.permute.xlu0 0
      %400 = vperm.xlu0 %399, %v386
      %v401 = vpop.permute.xlu0 %400
      %404 = vset.pattern.permute.xlu0 0
      %405 = vperm.xlu0 %404, %v387
      %v406 = vpop.permute.xlu0 %405
      %v408 = vadd.f32 %v376, %v391
      %v409 = vadd.f32 %v377, %v391
      %v410 = vadd.f32 %v378, %v396
      %v411 = vadd.f32 %v379, %v396
      %v412 = vadd.f32 %v380, %v401
      %v413 = vadd.f32 %v381, %v401
      %v414 = vadd.f32 %v382, %v406
      %v415 = vadd.f32 %v383, %v406
      %v416 = vtanh.pop %v408
      %v417 = vtanh.pop %v409
      %v418 = vtanh.pop %v410
      %v419 = vtanh.pop %v411
      %v420 = vtanh.pop %v412
      %v421 = vtanh.pop %v413
      %v422 = vtanh.pop %v414
      %v423 = vtanh.pop %v415
      %v424 = vld [vmem:[%s3] sm:$0xff]
      %v425 = vld [vmem:[%s3 + $0x8] sm:$0xff]
      %v426 = vld [vmem:[%s3 + $0x10] sm:$0xff]
      %v427 = vld [vmem:[%s3 + $0x18] sm:$0xff]
      %v428 = vld [vmem:[%s4] sm:$0xff]
      %v429 = vld [vmem:[%s4 + $0x8] sm:$0xff]
      %v430 = vld [vmem:[%s4 + $0x10] sm:$0xff]
      %v431 = vld [vmem:[%s4 + $0x18] sm:$0xff]
      %433 = vset.pattern.permute.xlu0 0
      %434 = vperm.xlu0 %433, %v428
      %v435 = vpop.permute.xlu0 %434
      %438 = vset.pattern.permute.xlu0 0
      %439 = vperm.xlu0 %438, %v429
      %v440 = vpop.permute.xlu0 %439
      %443 = vset.pattern.permute.xlu0 0
      %444 = vperm.xlu0 %443, %v430
      %v445 = vpop.permute.xlu0 %444
      %448 = vset.pattern.permute.xlu0 0
      %449 = vperm.xlu0 %448, %v431
      %v450 = vpop.permute.xlu0 %449
      %vm452 = vcmask 261120
      %v454 = vsel %vm452, %v424, 0
      %v457 = vsel %vm452, %v425, 0
      %v460 = vsel %vm452, %v426, 0
      %v463 = vsel %vm452, %v427, 0
      %465 = vmatprep.subr.mxu0 %v417
      %466 = vmatpush1.msra.mxu0 %v416
      %467 = vmatprep.subr.mxu0 %v419
      %468 = vmatpush1.msra.mxu0 %v418
      %469 = vmatprep.subr.mxu0 %v421
      %470 = vmatpush1.msra.mxu0 %v420
      %471 = vmatprep.subr.mxu0 %v423
      %472 = vmatpush1.msra.mxu0 %v422
      %473 = vmatprep.subr.mxu0 0.0
      %474 = vmatpush1.msra.mxu0 0.0
      %475 = vmatprep.subr.mxu0 0.0
      %476 = vmatpush1.msra.mxu0 0.0
      %477 = vmatprep.subr.mxu0 0.0
      %478 = vmatpush1.msra.mxu0 0.0
      %479 = vmatprep.subr.mxu0 0.0
      %480 = vmatpush1.msra.mxu0 0.0
      %481 = vmatprep.subr.mxu0 0.0
      %482 = vmatpush1.msra.mxu0 0.0
      %483 = vmatprep.subr.mxu0 0.0
      %484 = vmatpush1.msra.mxu0 0.0
      %485 = vmatprep.subr.mxu0 0.0
      %486 = vmatpush1.msra.mxu0 0.0
      %487 = vmatprep.subr.mxu0 0.0
      %488 = vmatpush1.msra.mxu0 0.0
      %489 = vmatprep.subr.mxu0 0.0
      %490 = vmatpush1.msra.mxu0 0.0
      %491 = vmatprep.subr.mxu0 0.0
      %492 = vmatpush1.msra.mxu0 0.0
      %493 = vmatprep.subr.mxu0 0.0
      %494 = vmatpush1.msra.mxu0 0.0
      %495 = vmatprep.subr.mxu0 0.0
      %496 = vmatpush1.msra.mxu0 0.0
      %497 = vmatprep.subr.mxu0 0.0
      %498 = vmatpush1.msra.mxu0 0.0
      %499 = vmatprep.subr.mxu0 0.0
      %500 = vmatpush1.msra.mxu0 0.0
      %501 = vmatprep.subr.mxu0 0.0
      %502 = vmatpush1.msra.mxu0 0.0
      %503 = vmatprep.subr.mxu0 0.0
      %504 = vmatpush1.msra.mxu0 0.0
      %505 = vmatprep.subr.mxu0 0.0
      %506 = vmatpush1.msra.mxu0 0.0
      %507 = vmatprep.subr.mxu0 0.0
      %508 = vmatpush1.msra.mxu0 0.0
      %509 = vmatprep.subr.mxu0 0.0
      %510 = vmatpush1.msra.mxu0 0.0
      %511 = vmatprep.subr.mxu0 0.0
      %512 = vmatpush1.msra.mxu0 0.0
      %513 = vmatprep.subr.mxu0 0.0
      %514 = vmatpush1.msra.mxu0 0.0
      %515 = vmatprep.subr.mxu0 0.0
      %516 = vmatpush1.msra.mxu0 0.0
      %517 = vmatprep.subr.mxu0 0.0
      %518 = vmatpush1.msra.mxu0 0.0
      %519 = vmatprep.subr.mxu0 0.0
      %520 = vmatpush1.msra.mxu0 0.0
      %521 = vmatprep.subr.mxu0 0.0
      %522 = vmatpush1.msra.mxu0 0.0
      %523 = vmatprep.subr.mxu0 0.0
      %524 = vmatpush1.msra.mxu0 0.0
      %525 = vmatprep.subr.mxu0 0.0
      %526 = vmatpush1.msra.mxu0 0.0
      %527 = vmatprep.subr.mxu0 0.0
      %528 = vmatpush1.msra.mxu0 0.0
      %529 = vmatprep.mubr.f32.mxu0 0.0
      %530 = vmatmul.mubr.f32.gmra.mrb[0].mxu0 %v454
      %v531 = vpop.f32.mrb[0].mxu0
      %v532 = vadd.f32 %v435, %v531
      %v533 = vpop.f32.mrb[0].mxu0
      %v534 = vadd.f32 %v435, %v533
      %535 = vmatprep.mubr.f32.mxu0 0.0
      %536 = vmatmul.mubr.f32.gmra.mrb[0].mxu0 %v457
      %v537 = vpop.f32.mrb[0].mxu0
      %v538 = vadd.f32 %v440, %v537
      %v539 = vpop.f32.mrb[0].mxu0
      %v540 = vadd.f32 %v440, %v539
      %541 = vmatprep.mubr.f32.mxu0 0.0
      %542 = vmatmul.mubr.f32.gmra.mrb[0].mxu0 %v460
      %v543 = vpop.f32.mrb[0].mxu0
      %v544 = vadd.f32 %v445, %v543
      %v545 = vpop.f32.mrb[0].mxu0
      %v546 = vadd.f32 %v445, %v545
      %547 = vmatprep.mubr.f32.mxu0 0.0
      %548 = vmatmul.mubr.f32.gmra.mrb[0].mxu0 %v463
      %v549 = vpop.f32.mrb[0].mxu0
      %v550 = vadd.f32 %v450, %v549
      %v551 = vpop.f32.mrb[0].mxu0
      %v552 = vadd.f32 %v450, %v551
      %553 = vdwg.mxu0
      %v554 = vtanh.pop %v532
      %v555 = vtanh.pop %v534
      %v556 = vtanh.pop %v538
      %v557 = vtanh.pop %v540
      %v558 = vtanh.pop %v544
      %v559 = vtanh.pop %v546
      %v560 = vtanh.pop %v550
      %v561 = vtanh.pop %v552
      %s562 = scalar_lea.vmem %s3, 32
      %v563 = vld [vmem:[%s562] sm:$0xff]
      %v564 = vld [vmem:[%s562 + $0x8] sm:$0xff]
      %v565 = vld [vmem:[%s562 + $0x10] sm:$0xff]
      %v566 = vld [vmem:[%s562 + $0x18] sm:$0xff]
      %s567 = scalar_lea.vmem %s4, 32
      %v568 = vld [vmem:[%s567] sm:$0xff]
      %v569 = vld [vmem:[%s567 + $0x8] sm:$0xff]
      %v570 = vld [vmem:[%s567 + $0x10] sm:$0xff]
      %v571 = vld [vmem:[%s567 + $0x18] sm:$0xff]
      %573 = vset.pattern.permute.xlu0 0
      %574 = vperm.xlu0 %573, %v568
      %v575 = vpop.permute.xlu0 %574
      %578 = vset.pattern.permute.xlu0 0
      %579 = vperm.xlu0 %578, %v569
      %v580 = vpop.permute.xlu0 %579
      %583 = vset.pattern.permute.xlu0 0
      %584 = vperm.xlu0 %583, %v570
      %v585 = vpop.permute.xlu0 %584
      %588 = vset.pattern.permute.xlu0 0
      %589 = vperm.xlu0 %588, %v571
      %v590 = vpop.permute.xlu0 %589
      %v593 = vsel %vm452, %v563, 0
      %v596 = vsel %vm452, %v564, 0
      %v599 = vsel %vm452, %v565, 0
      %v602 = vsel %vm452, %v566, 0
      %604 = vmatprep.subr.mxu0 %v555
      %605 = vmatpush1.msra.mxu0 %v554
      %606 = vmatprep.subr.mxu0 %v557
      %607 = vmatpush1.msra.mxu0 %v556
      %608 = vmatprep.subr.mxu0 %v559
      %609 = vmatpush1.msra.mxu0 %v558
      %610 = vmatprep.subr.mxu0 %v561
      %611 = vmatpush1.msra.mxu0 %v560
      %612 = vmatprep.subr.mxu0 0.0
      %613 = vmatpush1.msra.mxu0 0.0
      %614 = vmatprep.subr.mxu0 0.0
      %615 = vmatpush1.msra.mxu0 0.0
      %616 = vmatprep.subr.mxu0 0.0
      %617 = vmatpush1.msra.mxu0 0.0
      %618 = vmatprep.subr.mxu0 0.0
      %619 = vmatpush1.msra.mxu0 0.0
      %620 = vmatprep.subr.mxu0 0.0
      %621 = vmatpush1.msra.mxu0 0.0
      %622 = vmatprep.subr.mxu0 0.0
      %623 = vmatpush1.msra.mxu0 0.0
      %624 = vmatprep.subr.mxu0 0.0
      %625 = vmatpush1.msra.mxu0 0.0
      %626 = vmatprep.subr.mxu0 0.0
      %627 = vmatpush1.msra.mxu0 0.0
      %628 = vmatprep.subr.mxu0 0.0
      %629 = vmatpush1.msra.mxu0 0.0
      %630 = vmatprep.subr.mxu0 0.0
      %631 = vmatpush1.msra.mxu0 0.0
      %632 = vmatprep.subr.mxu0 0.0
      %633 = vmatpush1.msra.mxu0 0.0
      %634 = vmatprep.subr.mxu0 0.0
      %635 = vmatpush1.msra.mxu0 0.0
      %636 = vmatprep.subr.mxu0 0.0
      %637 = vmatpush1.msra.mxu0 0.0
      %638 = vmatprep.subr.mxu0 0.0
      %639 = vmatpush1.msra.mxu0 0.0
      %640 = vmatprep.subr.mxu0 0.0
      %641 = vmatpush1.msra.mxu0 0.0
      %642 = vmatprep.subr.mxu0 0.0
      %643 = vmatpush1.msra.mxu0 0.0
      %644 = vmatprep.subr.mxu0 0.0
      %645 = vmatpush1.msra.mxu0 0.0
      %646 = vmatprep.subr.mxu0 0.0
      %647 = vmatpush1.msra.mxu0 0.0
      %648 = vmatprep.subr.mxu0 0.0
      %649 = vmatpush1.msra.mxu0 0.0
      %650 = vmatprep.subr.mxu0 0.0
      %651 = vmatpush1.msra.mxu0 0.0
      %652 = vmatprep.subr.mxu0 0.0
      %653 = vmatpush1.msra.mxu0 0.0
      %654 = vmatprep.subr.mxu0 0.0
      %655 = vmatpush1.msra.mxu0 0.0
      %656 = vmatprep.subr.mxu0 0.0
      %657 = vmatpush1.msra.mxu0 0.0
      %658 = vmatprep.subr.mxu0 0.0
      %659 = vmatpush1.msra.mxu0 0.0
      %660 = vmatprep.subr.mxu0 0.0
      %661 = vmatpush1.msra.mxu0 0.0
      %662 = vmatprep.subr.mxu0 0.0
      %663 = vmatpush1.msra.mxu0 0.0
      %664 = vmatprep.subr.mxu0 0.0
      %665 = vmatpush1.msra.mxu0 0.0
      %666 = vmatprep.subr.mxu0 0.0
      %667 = vmatpush1.msra.mxu0 0.0
      %668 = vmatprep.mubr.f32.mxu0 0.0
      %669 = vmatmul.mubr.f32.gmra.mrb[0].mxu0 %v593
      %v670 = vpop.f32.mrb[0].mxu0
      %v671 = vadd.f32 %v575, %v670
      %v672 = vpop.f32.mrb[0].mxu0
      %v673 = vadd.f32 %v575, %v672
      %674 = vmatprep.mubr.f32.mxu0 0.0
      %675 = vmatmul.mubr.f32.gmra.mrb[0].mxu0 %v596
      %v676 = vpop.f32.mrb[0].mxu0
      %v677 = vadd.f32 %v580, %v676
      %v678 = vpop.f32.mrb[0].mxu0
      %v679 = vadd.f32 %v580, %v678
      %680 = vmatprep.mubr.f32.mxu0 0.0
      %681 = vmatmul.mubr.f32.gmra.mrb[0].mxu0 %v599
      %v682 = vpop.f32.mrb[0].mxu0
      %v683 = vadd.f32 %v585, %v682
      %v684 = vpop.f32.mrb[0].mxu0
      %v685 = vadd.f32 %v585, %v684
      %686 = vmatprep.mubr.f32.mxu0 0.0
      %687 = vmatmul.mubr.f32.gmra.mrb[0].mxu0 %v602
      %v688 = vpop.f32.mrb[0].mxu0
      %v689 = vadd.f32 %v590, %v688
      %v690 = vpop.f32.mrb[0].mxu0
      %v691 = vadd.f32 %v590, %v690
      %692 = vdwg.mxu0
      %v693 = vtanh.pop %v671
      %v694 = vtanh.pop %v673
      %v695 = vtanh.pop %v677
      %v696 = vtanh.pop %v679
      %v697 = vtanh.pop %v683
      %v698 = vtanh.pop %v685
      %v699 = vtanh.pop %v689
      %v700 = vtanh.pop %v691
      %s701 = scalar_lea.vmem %s3, 64
      %v702 = vld [vmem:[%s701] sm:$0xff]
      %v703 = vld [vmem:[%s701 + $0x8] sm:$0xff]
      %v704 = vld [vmem:[%s701 + $0x10] sm:$0xff]
      %v705 = vld [vmem:[%s701 + $0x18] sm:$0xff]
      %s706 = scalar_lea.vmem %s4, 64
      %v707 = vld [vmem:[%s706] sm:$0xff]
      %v708 = vld [vmem:[%s706 + $0x8] sm:$0xff]
      %v709 = vld [vmem:[%s706 + $0x10] sm:$0xff]
      %v710 = vld [vmem:[%s706 + $0x18] sm:$0xff]
      %712 = vset.pattern.permute.xlu0 0
      %713 = vperm.xlu0 %712, %v707
      %v714 = vpop.permute.xlu0 %713
      %717 = vset.pattern.permute.xlu0 0
      %718 = vperm.xlu0 %717, %v708
      %v719 = vpop.permute.xlu0 %718
      %722 = vset.pattern.permute.xlu0 0
      %723 = vperm.xlu0 %722, %v709
      %v724 = vpop.permute.xlu0 %723
      %727 = vset.pattern.permute.xlu0 0
      %728 = vperm.xlu0 %727, %v710
      %v729 = vpop.permute.xlu0 %728
      %v732 = vsel %vm452, %v702, 0
      %v735 = vsel %vm452, %v703, 0
      %v738 = vsel %vm452, %v704, 0
      %v741 = vsel %vm452, %v705, 0
      %743 = vmatprep.subr.mxu0 %v694
      %744 = vmatpush1.msra.mxu0 %v693
      %745 = vmatprep.subr.mxu0 %v696
      %746 = vmatpush1.msra.mxu0 %v695
      %747 = vmatprep.subr.mxu0 %v698
      %748 = vmatpush1.msra.mxu0 %v697
      %749 = vmatprep.subr.mxu0 %v700
      %750 = vmatpush1.msra.mxu0 %v699
      %751 = vmatprep.subr.mxu0 0.0
      %752 = vmatpush1.msra.mxu0 0.0
      %753 = vmatprep.subr.mxu0 0.0
      %754 = vmatpush1.msra.mxu0 0.0
      %755 = vmatprep.subr.mxu0 0.0
      %756 = vmatpush1.msra.mxu0 0.0
      %757 = vmatprep.subr.mxu0 0.0
      %758 = vmatpush1.msra.mxu0 0.0
      %759 = vmatprep.subr.mxu0 0.0
      %760 = vmatpush1.msra.mxu0 0.0
      %761 = vmatprep.subr.mxu0 0.0
      %762 = vmatpush1.msra.mxu0 0.0
      %763 = vmatprep.subr.mxu0 0.0
      %764 = vmatpush1.msra.mxu0 0.0
      %765 = vmatprep.subr.mxu0 0.0
      %766 = vmatpush1.msra.mxu0 0.0
      %767 = vmatprep.subr.mxu0 0.0
      %768 = vmatpush1.msra.mxu0 0.0
      %769 = vmatprep.subr.mxu0 0.0
      %770 = vmatpush1.msra.mxu0 0.0
      %771 = vmatprep.subr.mxu0 0.0
      %772 = vmatpush1.msra.mxu0 0.0
      %773 = vmatprep.subr.mxu0 0.0
      %774 = vmatpush1.msra.mxu0 0.0
      %775 = vmatprep.subr.mxu0 0.0
      %776 = vmatpush1.msra.mxu0 0.0
      %777 = vmatprep.subr.mxu0 0.0
      %778 = vmatpush1.msra.mxu0 0.0
      %779 = vmatprep.subr.mxu0 0.0
      %780 = vmatpush1.msra.mxu0 0.0
      %781 = vmatprep.subr.mxu0 0.0
      %782 = vmatpush1.msra.mxu0 0.0
      %783 = vmatprep.subr.mxu0 0.0
      %784 = vmatpush1.msra.mxu0 0.0
      %785 = vmatprep.subr.mxu0 0.0
      %786 = vmatpush1.msra.mxu0 0.0
      %787 = vmatprep.subr.mxu0 0.0
      %788 = vmatpush1.msra.mxu0 0.0
      %789 = vmatprep.subr.mxu0 0.0
      %790 = vmatpush1.msra.mxu0 0.0
      %791 = vmatprep.subr.mxu0 0.0
      %792 = vmatpush1.msra.mxu0 0.0
      %793 = vmatprep.subr.mxu0 0.0
      %794 = vmatpush1.msra.mxu0 0.0
      %795 = vmatprep.subr.mxu0 0.0
      %796 = vmatpush1.msra.mxu0 0.0
      %797 = vmatprep.subr.mxu0 0.0
      %798 = vmatpush1.msra.mxu0 0.0
      %799 = vmatprep.subr.mxu0 0.0
      %800 = vmatpush1.msra.mxu0 0.0
      %801 = vmatprep.subr.mxu0 0.0
      %802 = vmatpush1.msra.mxu0 0.0
      %803 = vmatprep.subr.mxu0 0.0
      %804 = vmatpush1.msra.mxu0 0.0
      %805 = vmatprep.subr.mxu0 0.0
      %806 = vmatpush1.msra.mxu0 0.0
      %807 = vmatprep.mubr.f32.mxu0 0.0
      %808 = vmatmul.mubr.f32.gmra.mrb[0].mxu0 %v732
      %v809 = vpop.f32.mrb[0].mxu0
      %v810 = vadd.f32 %v714, %v809
      %v811 = vpop.f32.mrb[0].mxu0
      %v812 = vadd.f32 %v714, %v811
      %813 = vmatprep.mubr.f32.mxu0 0.0
      %814 = vmatmul.mubr.f32.gmra.mrb[0].mxu0 %v735
      %v815 = vpop.f32.mrb[0].mxu0
      %v816 = vadd.f32 %v719, %v815
      %v817 = vpop.f32.mrb[0].mxu0
      %v818 = vadd.f32 %v719, %v817
      %819 = vmatprep.mubr.f32.mxu0 0.0
      %820 = vmatmul.mubr.f32.gmra.mrb[0].mxu0 %v738
      %v821 = vpop.f32.mrb[0].mxu0
      %v822 = vadd.f32 %v724, %v821
      %v823 = vpop.f32.mrb[0].mxu0
      %v824 = vadd.f32 %v724, %v823
      %825 = vmatprep.mubr.f32.mxu0 0.0
      %826 = vmatmul.mubr.f32.gmra.mrb[0].mxu0 %v741
      %v827 = vpop.f32.mrb[0].mxu0
      %v828 = vadd.f32 %v729, %v827
      %v829 = vpop.f32.mrb[0].mxu0
      %v830 = vadd.f32 %v729, %v829
      %831 = vdwg.mxu0
      %v832 = vtanh.pop %v810
      %v833 = vtanh.pop %v812
      %v834 = vtanh.pop %v816
      %v835 = vtanh.pop %v818
      %v836 = vtanh.pop %v822
      %v837 = vtanh.pop %v824
      %v838 = vtanh.pop %v828
      %v839 = vtanh.pop %v830
      %v840 = vld [vmem:[%s5] sm:$0x1]
      %v841 = vld [vmem:[#allocation2] sm:$0x1]
      %843 = vset.pattern.permute.xlu0 0
      %844 = vperm.xlu0 %843, %v841
      %v845 = vpop.permute.xlu0 %844
      %v847 = vlaneseq
      %v848 = vshrl.u32 %v847, 7
      %v849 = vsub.s32 0, %v848
      %v850 = vrot.slane %v845, %v849
      %v852 = vsel %vm452, %v840, 0
      %854 = vmatprep.subr.mxu0 %v833
      %855 = vmatpush1.msra.mxu0 %v832
      %856 = vmatprep.subr.mxu0 %v835
      %857 = vmatpush1.msra.mxu0 %v834
      %858 = vmatprep.subr.mxu0 %v837
      %859 = vmatpush1.msra.mxu0 %v836
      %860 = vmatprep.subr.mxu0 %v839
      %861 = vmatpush1.msra.mxu0 %v838
      %862 = vmatprep.subr.mxu0 0.0
      %863 = vmatpush1.msra.mxu0 0.0
      %864 = vmatprep.subr.mxu0 0.0
      %865 = vmatpush1.msra.mxu0 0.0
      %866 = vmatprep.subr.mxu0 0.0
      %867 = vmatpush1.msra.mxu0 0.0
      %868 = vmatprep.subr.mxu0 0.0
      %869 = vmatpush1.msra.mxu0 0.0
      %870 = vmatprep.subr.mxu0 0.0
      %871 = vmatpush1.msra.mxu0 0.0
      %872 = vmatprep.subr.mxu0 0.0
      %873 = vmatpush1.msra.mxu0 0.0
      %874 = vmatprep.subr.mxu0 0.0
      %875 = vmatpush1.msra.mxu0 0.0
      %876 = vmatprep.subr.mxu0 0.0
      %877 = vmatpush1.msra.mxu0 0.0
      %878 = vmatprep.subr.mxu0 0.0
      %879 = vmatpush1.msra.mxu0 0.0
      %880 = vmatprep.subr.mxu0 0.0
      %881 = vmatpush1.msra.mxu0 0.0
      %882 = vmatprep.subr.mxu0 0.0
      %883 = vmatpush1.msra.mxu0 0.0
      %884 = vmatprep.subr.mxu0 0.0
      %885 = vmatpush1.msra.mxu0 0.0
      %886 = vmatprep.subr.mxu0 0.0
      %887 = vmatpush1.msra.mxu0 0.0
      %888 = vmatprep.subr.mxu0 0.0
      %889 = vmatpush1.msra.mxu0 0.0
      %890 = vmatprep.subr.mxu0 0.0
      %891 = vmatpush1.msra.mxu0 0.0
      %892 = vmatprep.subr.mxu0 0.0
      %893 = vmatpush1.msra.mxu0 0.0
      %894 = vmatprep.subr.mxu0 0.0
      %895 = vmatpush1.msra.mxu0 0.0
      %896 = vmatprep.subr.mxu0 0.0
      %897 = vmatpush1.msra.mxu0 0.0
      %898 = vmatprep.subr.mxu0 0.0
      %899 = vmatpush1.msra.mxu0 0.0
      %900 = vmatprep.subr.mxu0 0.0
      %901 = vmatpush1.msra.mxu0 0.0
      %902 = vmatprep.subr.mxu0 0.0
      %903 = vmatpush1.msra.mxu0 0.0
      %904 = vmatprep.subr.mxu0 0.0
      %905 = vmatpush1.msra.mxu0 0.0
      %906 = vmatprep.subr.mxu0 0.0
      %907 = vmatpush1.msra.mxu0 0.0
      %908 = vmatprep.subr.mxu0 0.0
      %909 = vmatpush1.msra.mxu0 0.0
      %910 = vmatprep.subr.mxu0 0.0
      %911 = vmatpush1.msra.mxu0 0.0
      %912 = vmatprep.subr.mxu0 0.0
      %913 = vmatpush1.msra.mxu0 0.0
      %914 = vmatprep.subr.mxu0 0.0
      %915 = vmatpush1.msra.mxu0 0.0
      %916 = vmatprep.subr.mxu0 0.0
      %917 = vmatpush1.msra.mxu0 0.0
      %918 = vmatprep.mubr.f32.mxu0 0.0
      %919 = vmatmul.mubr.f32.gmra.mrb[0].mxu0 %v852
      %v920 = vpop.f32.mrb[0].mxu0
      %v921 = vadd.f32 %v850, %v920
      %v922 = vpop.f32.mrb[0].mxu0
      %v923 = vadd.f32 %v850, %v922
      %924 = vdwg.mxu0
      %v927 = vcombine.low %v921, %v923
      %v929 = vunpack.c.l.s4 1966171168
      %v930 = vunpack.c.0.s8 %v929
      %v931 = vlaneseq
      %v932 = vshrl.u32 %v931, 7
      %v933 = vsub.s32 %v930, %v932
      %v934 = vrot.slane %v927, %v933
      %v936 = vunpack.c.l.s4 1966171168
      %v937 = vunpack.c.0.s8 %v936
      %v938 = vlaneseq
      %v939 = vshrl.u32 %v938, 7
      %v940 = vsub.s32 %v937, %v939
      %v941 = vrot.slane %v934, %v940
      %v943 = vlaneseq
      %vm944 = vcmp.ge.s32.totalorder %v943, 0
      %vm945 = vcmp.lt.s32.totalorder %v943, 256
      %vm946 = vmand %vm944, %vm945
      %947 = vst.msk [vmem:[%s280] sm:$0x3] %vm946, %v941
      %s948 = smul.u32 2, %s20
      %p949 = scmp.lt.s32.totalorder %s948, 3
      %s950 = scalar_select %p949, %s948, 3
      %s951 = scalar_lea.vmem %s7, %s950
      // Predicated region
      $region49: #{_network_forward_impl.1} parent=47 // pred_check
        %p952 = pneg %p190
      $region50: #{_network_forward_impl.1} parent=47 // pred_check_branch
        %954 = sbr.rel (%p952) target = $region52
      $region51: #{_network_forward_impl.1} parent=47 // pred_region
        %s955 = smul.u32 2, %s20
      $region52: #{_network_forward_impl.1} parent=47 // pred_fallthru
        _
    $region48: #{_network_forward_impl.1} parent=5 // pred_fallthru
      _
    %p956 = scmp.le.s32.totalorder 2, %s15
    // Predicated region
    $region53: #{_network_forward_impl.1} parent=5 // pred_check
      %p957 = pneg %p956
    $region54: #{_network_forward_impl.1} parent=5 // pred_check_branch
      %959 = sbr.rel (%p957) target = $region56
    $region55: #{_network_forward_impl.1} parent=5 // pred_region
      %s960 = ssub.s32 %s15, 2
      // Predicated region
      $region57: #{_network_forward_impl.1} parent=55 // pred_check
        %p961 = pneg %p196
      $region58: #{_network_forward_impl.1} parent=55 // pred_check_branch
        %963 = sbr.rel (%p961) target = $region60
      $region59: #{_network_forward_impl.1} parent=55 // pred_region
        %s964 = smul.u32 2, %s21
        %p965 = scmp.lt.s32.totalorder %s964, 3
        %s966 = scalar_select %p965, %s964, 3
        %s967 = scalar_lea.vmem %s7, %s966
      $region60: #{_network_forward_impl.1} parent=55 // pred_fallthru
        _
    $region56: #{_network_forward_impl.1} parent=5 // pred_fallthru
      _
  $region6: #{_network_forward_impl.1} parent=0 // loop_footer
    %s19 = sadd.s32 1, %s15
  $region7: #{_network_forward_impl.1} parent=0 // loop_footer_branch
    %14 = sbr.rel target = $region3
  $region8: #{_network_forward_impl.1} parent=0 // loop_exit
    _

</llo_original>
